<compile_context>
chip_gen: v7x
topology: tpu7x:2x2x1
jax: 0.10.0
libtpu: 0.0.40
codegen_flags: <defaults>
</compile_context>

<pallas_src>
import jax
import jax.numpy as jnp
from jax.experimental import pallas as pl
from jax.experimental.pallas import tpu as pltpu

K = 7     # conv kernel size
PAD = 3   # conv padding ("same" for stride=1)


def basic_block1d_kernel(x_ref, w1_ref, b1_ref, w2_ref, b2_ref, out_ref):
    # x_ref  : (B_TILE, C, L)    bf16  (unpadded input; also the residual)
    # w1_ref : (Cout, K*C)       bf16  conv1 weight, BN1 scale folded in
    # b1_ref : (Cout, 1)         f32   BN1 shift
    # w2_ref : (Cout, K*Cout)    bf16  conv2 weight, BN2 scale folded in
    # b2_ref : (Cout, 1)         f32   BN2 shift
    # out_ref: (B_TILE, Cout, L) f32
    b_tile, cin, L = x_ref.shape
    cout = w1_ref.shape[0]

    w1 = w1_ref[...]
    w2 = w2_ref[...]
    b1 = b1_ref[...]
    b2 = b2_ref[...]

    zin = jnp.zeros((cin, PAD), dtype=x_ref.dtype)       # conv1 halo columns
    zh = jnp.zeros((cout, PAD), dtype=jnp.bfloat16)      # conv2 halo columns

    for b in range(b_tile):                               # static unroll
        xb = x_ref[b]                                     # (C, L) bf16

        # ---- conv1 (+ folded BN1 scale) as ONE deep matmul -------------
        xpad = jnp.concatenate([zin, xb, zin], axis=1)    # (C, L + 2*PAD)
        cols1 = jnp.concatenate([xpad[:, k:k + L] for k in range(K)],
                                axis=0)                    # (K*C, L)
        h = jnp.dot(w1, cols1, preferred_element_type=jnp.float32)  # (Cout, L)

        # ---- BN1 shift + ReLU (dropout p=0.2 is identity in eval) ------
        h = jnp.maximum(h + b1, 0.0)
        # TODO(synk): training-mode dropout mask (stateful PRNG) not implemented.

        # ---- conv2 (+ folded BN2 scale) as ONE deep matmul -------------
        hb = h.astype(jnp.bfloat16)
        hpad = jnp.concatenate([zh, hb, zh], axis=1)       # (Cout, L + 2*PAD)
        cols2 = jnp.concatenate([hpad[:, k:k + L] for k in range(K)],
                                axis=0)                    # (K*Cout, L)
        o = jnp.dot(w2, cols2, preferred_element_type=jnp.float32)  # (Cout, L)

        # ---- BN2 shift + identity residual + ReLU ----------------------
        o = o + b2 + xb.astype(jnp.float32)
        out_ref[b] = jnp.maximum(o, 0.0)


def fold_bn(gamma, beta, running_mean, running_var, eps=1e-5):
    scale = gamma / jnp.sqrt(running_var + eps)
    shift = beta - running_mean * scale
    return scale, shift


def basic_block1d(x, w1, bn1, w2, bn2, *, b_tile=None):
    """x: (N, C, L) float32; w1: (Cout, C, K); w2: (Cout, Cout, K);
    bn1/bn2: tuples (gamma, beta, running_mean, running_var)."""
    N, Cin, L = x.shape
    Cout = w1.shape[0]
    assert Cin == Cout, "identity residual requires inplanes == planes"
    assert w1.shape == (Cout, Cin, K) and w2.shape == (Cout, Cout, K)

    # ---- wrapper-side constant prep (tiny, one-time) -------------------
    s1, sh1 = fold_bn(*bn1)
    s2, sh2 = fold_bn(*bn2)

    # flatten weights to (Cout, K*C) with inner index = k*C + c  (== w[o, c, k])
    w1_flat = jnp.transpose(w1, (0, 2, 1)).reshape(Cout, K * Cin)
    w2_flat = jnp.transpose(w2, (0, 2, 1)).reshape(Cout, K * Cout)
    # fold the per-output-channel BN scale into the conv weights
    w1_f = (w1_flat * s1[:, None]).astype(jnp.bfloat16)
    w2_f = (w2_flat * s2[:, None]).astype(jnp.bfloat16)
    b1 = sh1.reshape(Cout, 1).astype(jnp.float32)
    b2 = sh2.reshape(Cout, 1).astype(jnp.float32)

    x_bf = x.astype(jnp.bfloat16)   # halve HBM traffic; MXU-native operand

    # batch samples per grid step (amortize per-step pipeline overhead)
    if b_tile is None:
        b_tile = 1
        for cand in range(min(N, 8), 0, -1):
            if N % cand == 0:
                b_tile = cand
                break
    assert N % b_tile == 0
    grid = (N // b_tile,)

    # TODO(synk): for production shapes (Cout~256, L in the thousands) add an
    # L-tile grid axis with an explicit halo (memory_space=pl.ANY + manual
    # overlapping-window DMA) so double-buffered tiles fit v7x's 64 MiB VMEM.
    return pl.pallas_call(
        basic_block1d_kernel,
        out_shape=jax.ShapeDtypeStruct((N, Cout, L), jnp.float32),
        grid_spec=pltpu.PrefetchScalarGridSpec(
            num_scalar_prefetch=0,
            grid=grid,
            in_specs=[
                pl.BlockSpec((b_tile, Cin, L), lambda n: (n, 0, 0)),
                pl.BlockSpec((Cout, K * Cin), lambda n: (0, 0)),
                pl.BlockSpec((Cout, 1), lambda n: (0, 0)),
                pl.BlockSpec((Cout, K * Cout), lambda n: (0, 0)),
                pl.BlockSpec((Cout, 1), lambda n: (0, 0)),
            ],
            out_specs=pl.BlockSpec((b_tile, Cout, L), lambda n: (n, 0, 0)),
        ),
        compiler_params=pltpu.CompilerParams(
            dimension_semantics=("parallel",)),
    )(x_bf, w1_f, b1, w2_f, b2)


def reference_forward(x, w1, bn1, w2, bn2):
    """Pure-JAX f32 reference (same math, eval-mode BN/dropout)."""
    def conv(xx, ww):
        xp = jnp.pad(xx, ((0, 0), (0, 0), (PAD, PAD)))
        L = xx.shape[-1]
        out = jnp.zeros((xx.shape[0], ww.shape[0], L), jnp.float32)
        for k in range(K):
            out = out + jnp.einsum('oc,ncl->nol', ww[:, :, k],
                                   xp[:, :, k:k + L])
        return out

    def bn(h, params):
        g, b, m, v = params
        s = g / jnp.sqrt(v + 1e-5)
        return h * s[None, :, None] + (b - m * s)[None, :, None]

    h = jnp.maximum(bn(conv(x, w1), bn1), 0.0)
    o = bn(conv(h, w2), bn2)
    return jnp.maximum(o + x, 0.0)


if __name__ == "__main__":
    N, C, L = 2, 4, 16          # batch, inplanes=planes, sequence length
    key = jax.random.PRNGKey(0)
    k1, k2, k3, k4, k5, k6, k7, k8, k9 = jax.random.split(key, 9)

    x = jax.random.normal(k1, (N, C, L), dtype=jnp.float32)
    w1 = jax.random.normal(k2, (C, C, K), dtype=jnp.float32) * 0.1
    w2 = jax.random.normal(k3, (C, C, K), dtype=jnp.float32) * 0.1
    bn1 = (jax.random.uniform(k4, (C,), minval=0.5, maxval=1.5),
           jax.random.normal(k5, (C,)) * 0.1,
           jax.random.normal(k6, (C,)) * 0.1,
           jax.random.uniform(k7, (C,), minval=0.5, maxval=1.5))
    bn2 = (jax.random.uniform(k8, (C,), minval=0.5, maxval=1.5),
           jax.random.normal(k9, (C,)) * 0.1,
           jnp.zeros((C,), jnp.float32),
           jnp.ones((C,), jnp.float32))

    out = basic_block1d(x, w1, bn1, w2, bn2)
    out = jax.block_until_ready(out)

    ref = reference_forward(x, w1, bn1, w2, bn2)
    assert out.shape == (N, C, L)
    # bf16 operands (f32 accumulation) -> loosened tolerance vs f32 reference
    assert jnp.allclose(out, ref, atol=5e-2, rtol=5e-2), (
        "mismatch vs reference, max abs err = %e"
        % float(jnp.max(jnp.abs(out - ref))))

    print("KERNEL_OK")
</pallas_src>

<mosaic_0001>
module attributes {stable_mosaic.version = 11 : i64} {
  func.func @basic_block1d_kernel(%arg0: i32, %arg1: memref<2x4x16xbf16, #tpu.memory_space<vmem>>, %arg2: memref<4x28xbf16, #tpu.memory_space<vmem>>, %arg3: memref<4x1xf32, #tpu.memory_space<vmem>>, %arg4: memref<4x28xbf16, #tpu.memory_space<vmem>>, %arg5: memref<4x1xf32, #tpu.memory_space<vmem>>, %arg6: memref<2x4x16xf32, #tpu.memory_space<vmem>>) attributes {dimension_semantics = [#tpu.dimension_semantics<parallel>], iteration_bounds = array<i64: 1>, scalar_prefetch = 0 : i64, scratch_operands = 0 : i64, tpu.core_type = #tpu.core_type<tc>, window_params = [{transform_indices = @transform_0, window_bounds = array<i64: 2, 4, 16>}, {pipeline_mode = #tpu.pipeline_mode<synchronous>, transform_indices = @transform_1, window_bounds = array<i64: 4, 28>}, {pipeline_mode = #tpu.pipeline_mode<synchronous>, transform_indices = @transform_2, window_bounds = array<i64: 4, 1>}, {pipeline_mode = #tpu.pipeline_mode<synchronous>, transform_indices = @transform_3, window_bounds = array<i64: 4, 28>}, {pipeline_mode = #tpu.pipeline_mode<synchronous>, transform_indices = @transform_4, window_bounds = array<i64: 4, 1>}, {transform_indices = @transform_5, window_bounds = array<i64: 2, 4, 16>}]} {
    %c0 = arith.constant 0 : index
    %c0_0 = arith.constant 0 : index
    %0 = vector.load %arg2[%c0, %c0_0] : memref<4x28xbf16, #tpu.memory_space<vmem>>, vector<4x28xbf16>
    %c0_1 = arith.constant 0 : index
    %c0_2 = arith.constant 0 : index
    %1 = vector.load %arg4[%c0_1, %c0_2] : memref<4x28xbf16, #tpu.memory_space<vmem>>, vector<4x28xbf16>
    %c0_3 = arith.constant 0 : index
    %c0_4 = arith.constant 0 : index
    %2 = vector.load %arg3[%c0_3, %c0_4] : memref<4x1xf32, #tpu.memory_space<vmem>>, vector<4x1xf32>
    %c0_5 = arith.constant 0 : index
    %c0_6 = arith.constant 0 : index
    %3 = vector.load %arg5[%c0_5, %c0_6] : memref<4x1xf32, #tpu.memory_space<vmem>>, vector<4x1xf32>
    %cst = arith.constant 0.000000e+00 : bf16
    %4 = vector.broadcast %cst : bf16 to vector<4x3xbf16>
    %cst_7 = arith.constant 0.000000e+00 : bf16
    %5 = vector.broadcast %cst_7 : bf16 to vector<4x3xbf16>
    %c0_8 = arith.constant 0 : index
    %c0_9 = arith.constant 0 : index
    %c0_10 = arith.constant 0 : index
    %6 = vector.load %arg1[%c0_8, %c0_9, %c0_10] : memref<2x4x16xbf16, #tpu.memory_space<vmem>>, vector<1x4x16xbf16>
    %7 = vector.shape_cast %6 : vector<1x4x16xbf16> to vector<4x16xbf16>
    %8 = tpu.concatenate %4, %7, %4 in 1 : vector<4x3xbf16>, vector<4x16xbf16>, vector<4x3xbf16> -> vector<4x22xbf16>
    %9 = vector.extract_strided_slice %8 {offsets = [0, 0], sizes = [4, 16], strides = [1, 1]} : vector<4x22xbf16> to vector<4x16xbf16>
    %10 = vector.extract_strided_slice %8 {offsets = [0, 1], sizes = [4, 16], strides = [1, 1]} : vector<4x22xbf16> to vector<4x16xbf16>
    %11 = vector.extract_strided_slice %8 {offsets = [0, 2], sizes = [4, 16], strides = [1, 1]} : vector<4x22xbf16> to vector<4x16xbf16>
    %12 = vector.extract_strided_slice %8 {offsets = [0, 3], sizes = [4, 16], strides = [1, 1]} : vector<4x22xbf16> to vector<4x16xbf16>
    %13 = vector.extract_strided_slice %8 {offsets = [0, 4], sizes = [4, 16], strides = [1, 1]} : vector<4x22xbf16> to vector<4x16xbf16>
    %14 = vector.extract_strided_slice %8 {offsets = [0, 5], sizes = [4, 16], strides = [1, 1]} : vector<4x22xbf16> to vector<4x16xbf16>
    %15 = vector.extract_strided_slice %8 {offsets = [0, 6], sizes = [4, 16], strides = [1, 1]} : vector<4x22xbf16> to vector<4x16xbf16>
    %16 = tpu.concatenate %9, %10, %11, %12, %13, %14, %15 in 0 : vector<4x16xbf16>, vector<4x16xbf16>, vector<4x16xbf16>, vector<4x16xbf16>, vector<4x16xbf16>, vector<4x16xbf16>, vector<4x16xbf16> -> vector<28x16xbf16>
    %cst_11 = arith.constant dense<0.000000e+00> : vector<4x16xf32>
    %17 = tpu.matmul %0, %16, %cst_11 {dimension_numbers = #tpu.dot_dimension_numbers<[1], [0], [0], [1], [0, 0, 1, 1], [], []>} : vector<4x28xbf16>, vector<28x16xbf16>, vector<4x16xf32> -> vector<4x16xf32>
    %18 = vector.broadcast %2 : vector<4x1xf32> to vector<4x16xf32>
    %19 = arith.addf %17, %18 : vector<4x16xf32>
    %cst_12 = arith.constant 0.000000e+00 : f32
    %20 = vector.broadcast %cst_12 : f32 to vector<4x16xf32>
    %21 = arith.maximumf %19, %20 : vector<4x16xf32>
    %22 = arith.truncf %21 : vector<4x16xf32> to vector<4x16xbf16>
    %23 = tpu.concatenate %5, %22, %5 in 1 : vector<4x3xbf16>, vector<4x16xbf16>, vector<4x3xbf16> -> vector<4x22xbf16>
    %24 = vector.extract_strided_slice %23 {offsets = [0, 0], sizes = [4, 16], strides = [1, 1]} : vector<4x22xbf16> to vector<4x16xbf16>
    %25 = vector.extract_strided_slice %23 {offsets = [0, 1], sizes = [4, 16], strides = [1, 1]} : vector<4x22xbf16> to vector<4x16xbf16>
    %26 = vector.extract_strided_slice %23 {offsets = [0, 2], sizes = [4, 16], strides = [1, 1]} : vector<4x22xbf16> to vector<4x16xbf16>
    %27 = vector.extract_strided_slice %23 {offsets = [0, 3], sizes = [4, 16], strides = [1, 1]} : vector<4x22xbf16> to vector<4x16xbf16>
    %28 = vector.extract_strided_slice %23 {offsets = [0, 4], sizes = [4, 16], strides = [1, 1]} : vector<4x22xbf16> to vector<4x16xbf16>
    %29 = vector.extract_strided_slice %23 {offsets = [0, 5], sizes = [4, 16], strides = [1, 1]} : vector<4x22xbf16> to vector<4x16xbf16>
    %30 = vector.extract_strided_slice %23 {offsets = [0, 6], sizes = [4, 16], strides = [1, 1]} : vector<4x22xbf16> to vector<4x16xbf16>
    %31 = tpu.concatenate %24, %25, %26, %27, %28, %29, %30 in 0 : vector<4x16xbf16>, vector<4x16xbf16>, vector<4x16xbf16>, vector<4x16xbf16>, vector<4x16xbf16>, vector<4x16xbf16>, vector<4x16xbf16> -> vector<28x16xbf16>
    %cst_13 = arith.constant dense<0.000000e+00> : vector<4x16xf32>
    %32 = tpu.matmul %1, %31, %cst_13 {dimension_numbers = #tpu.dot_dimension_numbers<[1], [0], [0], [1], [0, 0, 1, 1], [], []>} : vector<4x28xbf16>, vector<28x16xbf16>, vector<4x16xf32> -> vector<4x16xf32>
    %33 = vector.broadcast %3 : vector<4x1xf32> to vector<4x16xf32>
    %34 = arith.addf %32, %33 : vector<4x16xf32>
    %35 = arith.extf %7 : vector<4x16xbf16> to vector<4x16xf32>
    %36 = arith.addf %34, %35 : vector<4x16xf32>
    %cst_14 = arith.constant 0.000000e+00 : f32
    %37 = vector.broadcast %cst_14 : f32 to vector<4x16xf32>
    %38 = arith.maximumf %36, %37 : vector<4x16xf32>
    %c0_15 = arith.constant 0 : index
    %c0_16 = arith.constant 0 : index
    %c0_17 = arith.constant 0 : index
    %39 = vector.load %arg6[%c0_15, %c0_16, %c0_17] : memref<2x4x16xf32, #tpu.memory_space<vmem>>, vector<1x4x16xf32>
    %40 = vector.shape_cast %39 : vector<1x4x16xf32> to vector<4x16xf32>
    %41 = vector.shape_cast %38 : vector<4x16xf32> to vector<1x4x16xf32>
    tpu.vector_store %arg6[%c0_15, %c0_16, %c0_17], %41 {strides = array<i32>} : memref<2x4x16xf32, #tpu.memory_space<vmem>>, vector<1x4x16xf32>,
    %c1 = arith.constant 1 : index
    %c0_18 = arith.constant 0 : index
    %c0_19 = arith.constant 0 : index
    %42 = vector.load %arg1[%c1, %c0_18, %c0_19] : memref<2x4x16xbf16, #tpu.memory_space<vmem>>, vector<1x4x16xbf16>
    %43 = vector.shape_cast %42 : vector<1x4x16xbf16> to vector<4x16xbf16>
    %44 = tpu.concatenate %4, %43, %4 in 1 : vector<4x3xbf16>, vector<4x16xbf16>, vector<4x3xbf16> -> vector<4x22xbf16>
    %45 = vector.extract_strided_slice %44 {offsets = [0, 0], sizes = [4, 16], strides = [1, 1]} : vector<4x22xbf16> to vector<4x16xbf16>
    %46 = vector.extract_strided_slice %44 {offsets = [0, 1], sizes = [4, 16], strides = [1, 1]} : vector<4x22xbf16> to vector<4x16xbf16>
    %47 = vector.extract_strided_slice %44 {offsets = [0, 2], sizes = [4, 16], strides = [1, 1]} : vector<4x22xbf16> to vector<4x16xbf16>
    %48 = vector.extract_strided_slice %44 {offsets = [0, 3], sizes = [4, 16], strides = [1, 1]} : vector<4x22xbf16> to vector<4x16xbf16>
    %49 = vector.extract_strided_slice %44 {offsets = [0, 4], sizes = [4, 16], strides = [1, 1]} : vector<4x22xbf16> to vector<4x16xbf16>
    %50 = vector.extract_strided_slice %44 {offsets = [0, 5], sizes = [4, 16], strides = [1, 1]} : vector<4x22xbf16> to vector<4x16xbf16>
    %51 = vector.extract_strided_slice %44 {offsets = [0, 6], sizes = [4, 16], strides = [1, 1]} : vector<4x22xbf16> to vector<4x16xbf16>
    %52 = tpu.concatenate %45, %46, %47, %48, %49, %50, %51 in 0 : vector<4x16xbf16>, vector<4x16xbf16>, vector<4x16xbf16>, vector<4x16xbf16>, vector<4x16xbf16>, vector<4x16xbf16>, vector<4x16xbf16> -> vector<28x16xbf16>
    %cst_20 = arith.constant dense<0.000000e+00> : vector<4x16xf32>
    %53 = tpu.matmul %0, %52, %cst_20 {dimension_numbers = #tpu.dot_dimension_numbers<[1], [0], [0], [1], [0, 0, 1, 1], [], []>} : vector<4x28xbf16>, vector<28x16xbf16>, vector<4x16xf32> -> vector<4x16xf32>
    %54 = vector.broadcast %2 : vector<4x1xf32> to vector<4x16xf32>
    %55 = arith.addf %53, %54 : vector<4x16xf32>
    %cst_21 = arith.constant 0.000000e+00 : f32
    %56 = vector.broadcast %cst_21 : f32 to vector<4x16xf32>
    %57 = arith.maximumf %55, %56 : vector<4x16xf32>
    %58 = arith.truncf %57 : vector<4x16xf32> to vector<4x16xbf16>
    %59 = tpu.concatenate %5, %58, %5 in 1 : vector<4x3xbf16>, vector<4x16xbf16>, vector<4x3xbf16> -> vector<4x22xbf16>
    %60 = vector.extract_strided_slice %59 {offsets = [0, 0], sizes = [4, 16], strides = [1, 1]} : vector<4x22xbf16> to vector<4x16xbf16>
    %61 = vector.extract_strided_slice %59 {offsets = [0, 1], sizes = [4, 16], strides = [1, 1]} : vector<4x22xbf16> to vector<4x16xbf16>
    %62 = vector.extract_strided_slice %59 {offsets = [0, 2], sizes = [4, 16], strides = [1, 1]} : vector<4x22xbf16> to vector<4x16xbf16>
    %63 = vector.extract_strided_slice %59 {offsets = [0, 3], sizes = [4, 16], strides = [1, 1]} : vector<4x22xbf16> to vector<4x16xbf16>
    %64 = vector.extract_strided_slice %59 {offsets = [0, 4], sizes = [4, 16], strides = [1, 1]} : vector<4x22xbf16> to vector<4x16xbf16>
    %65 = vector.extract_strided_slice %59 {offsets = [0, 5], sizes = [4, 16], strides = [1, 1]} : vector<4x22xbf16> to vector<4x16xbf16>
    %66 = vector.extract_strided_slice %59 {offsets = [0, 6], sizes = [4, 16], strides = [1, 1]} : vector<4x22xbf16> to vector<4x16xbf16>
    %67 = tpu.concatenate %60, %61, %62, %63, %64, %65, %66 in 0 : vector<4x16xbf16>, vector<4x16xbf16>, vector<4x16xbf16>, vector<4x16xbf16>, vector<4x16xbf16>, vector<4x16xbf16>, vector<4x16xbf16> -> vector<28x16xbf16>
    %cst_22 = arith.constant dense<0.000000e+00> : vector<4x16xf32>
    %68 = tpu.matmul %1, %67, %cst_22 {dimension_numbers = #tpu.dot_dimension_numbers<[1], [0], [0], [1], [0, 0, 1, 1], [], []>} : vector<4x28xbf16>, vector<28x16xbf16>, vector<4x16xf32> -> vector<4x16xf32>
    %69 = vector.broadcast %3 : vector<4x1xf32> to vector<4x16xf32>
    %70 = arith.addf %68, %69 : vector<4x16xf32>
    %71 = arith.extf %43 : vector<4x16xbf16> to vector<4x16xf32>
    %72 = arith.addf %70, %71 : vector<4x16xf32>
    %cst_23 = arith.constant 0.000000e+00 : f32
    %73 = vector.broadcast %cst_23 : f32 to vector<4x16xf32>
    %74 = arith.maximumf %72, %73 : vector<4x16xf32>
    %c1_24 = arith.constant 1 : index
    %c0_25 = arith.constant 0 : index
    %c0_26 = arith.constant 0 : index
    %75 = vector.load %arg6[%c1_24, %c0_25, %c0_26] : memref<2x4x16xf32, #tpu.memory_space<vmem>>, vector<1x4x16xf32>
    %76 = vector.shape_cast %75 : vector<1x4x16xf32> to vector<4x16xf32>
    %77 = vector.shape_cast %74 : vector<4x16xf32> to vector<1x4x16xf32>
    tpu.vector_store %arg6[%c1_24, %c0_25, %c0_26], %77 {strides = array<i32>} : memref<2x4x16xf32, #tpu.memory_space<vmem>>, vector<1x4x16xf32>,
    return
  }
  func.func @transform_0(%arg0: i32) -> (i32, i32, i32) {
    %c0_i32 = arith.constant 0 : i32
    %c0_i32_0 = arith.constant 0 : i32
    %c0_i32_1 = arith.constant 0 : i32
    return %arg0, %c0_i32, %c0_i32_0 : i32, i32, i32
  }
  func.func @transform_1(%arg0: i32) -> (i32, i32) {
    %c0_i32 = arith.constant 0 : i32
    %c0_i32_0 = arith.constant 0 : i32
    %c0_i32_1 = arith.constant 0 : i32
    return %c0_i32, %c0_i32_0 : i32, i32
  }
  func.func @transform_2(%arg0: i32) -> (i32, i32) {
    %c0_i32 = arith.constant 0 : i32
    %c0_i32_0 = arith.constant 0 : i32
    %c0_i32_1 = arith.constant 0 : i32
    return %c0_i32, %c0_i32_0 : i32, i32
  }
  func.func @transform_3(%arg0: i32) -> (i32, i32) {
    %c0_i32 = arith.constant 0 : i32
    %c0_i32_0 = arith.constant 0 : i32
    %c0_i32_1 = arith.constant 0 : i32
    return %c0_i32, %c0_i32_0 : i32, i32
  }
  func.func @transform_4(%arg0: i32) -> (i32, i32) {
    %c0_i32 = arith.constant 0 : i32
    %c0_i32_0 = arith.constant 0 : i32
    %c0_i32_1 = arith.constant 0 : i32
    return %c0_i32, %c0_i32_0 : i32, i32
  }
  func.func @transform_5(%arg0: i32) -> (i32, i32, i32) {
    %c0_i32 = arith.constant 0 : i32
    %c0_i32_0 = arith.constant 0 : i32
    %c0_i32_1 = arith.constant 0 : i32
    return %arg0, %c0_i32, %c0_i32_0 : i32, i32, i32
  }
}

</mosaic_0001>

<llo_original>
// kernel: tpu_custom_call.1
$region0: #{tpu_custom_call.1}
  #allocation0 [shape = 'u32[]', space=smem, size = 0x4, offset = 0x4, fixed_abs, tag = 'smem constant byte address 0x4 - core index']
  #allocation1 [shape = 'u32[144,128]{1,0:T(1,128)}', space=vmem, size = 0x12000, scoped, tag = 'internal scratch']
  %s0 = inlined_call_operand.vmem [shape: bf16[2,4,16], index: 0, kind: input, shape index: {}]
  %s1 = inlined_call_operand.vmem [shape: bf16[4,28], index: 1, kind: input, shape index: {}]
  %s2 = inlined_call_operand.vmem [shape: f32[4,1], index: 2, kind: input, shape index: {}]
  %s3 = inlined_call_operand.vmem [shape: bf16[4,28], index: 3, kind: input, shape index: {}]
  %s4 = inlined_call_operand.vmem [shape: f32[4,1], index: 4, kind: input, shape index: {}]
  %s5 = inlined_call_operand.hbm [shape: f32[2,4,16], index: 5, kind: output, shape index: {}]
  %s6 = sld [smem:[#allocation0]]
  $region30: #{tpu_custom_call.1} parent=0
    _
  %s8 = ssub.s32 1, %s6
  %s9 = scalar_select 0, %s8, %s6
  $region1: #{tpu_custom_call.1} parent=0
    #allocation2 [shape = 'u8[4096]{0}', space=vmem, size = 0x1000, scoped, tag = 'output window, operand 0, single buffered']
    #allocation3 [shape = 's32[1]{0}', space=sflag, size = 0x4, scoped, tag = 'scoped memory for tpu_custom_call.1']
    %10 = vsyncpa [#allocation3], 0
    // Predicated region
    $region2: #{tpu_custom_call.1} parent=1 // pred_check
      _
    $region3: #{tpu_custom_call.1} parent=1 // pred_check_branch
      %12 = sbr.rel (0) target = $region5
    $region4: #{tpu_custom_call.1} parent=1 // pred_region
      _
    $region5: #{tpu_custom_call.1} parent=1 // pred_fallthru
      _
    // Predicated region
    $region6: #{tpu_custom_call.1} parent=1 // pred_check
      _
    $region7: #{tpu_custom_call.1} parent=1 // pred_check_branch
      %14 = sbr.rel (0) target = $region9
    $region8: #{tpu_custom_call.1} parent=1 // pred_region
      _
    $region9: #{tpu_custom_call.1} parent=1 // pred_fallthru
      _
    // Predicated region
    $region10: #{tpu_custom_call.1} parent=1 // pred_check
      _
    $region11: #{tpu_custom_call.1} parent=1 // pred_check_branch
      %16 = sbr.rel (0) target = $region13
    $region12: #{tpu_custom_call.1} parent=1 // pred_region
      _
    $region13: #{tpu_custom_call.1} parent=1 // pred_fallthru
      _
    // Predicated region
    $region14: #{tpu_custom_call.1} parent=1 // pred_check
      _
    $region15: #{tpu_custom_call.1} parent=1 // pred_check_branch
      %18 = sbr.rel (0) target = $region17
    $region16: #{tpu_custom_call.1} parent=1 // pred_region
      _
    $region17: #{tpu_custom_call.1} parent=1 // pred_fallthru
      _
    // Predicated region
    $region18: #{tpu_custom_call.1} parent=1 // pred_check
      _
    $region19: #{tpu_custom_call.1} parent=1 // pred_check_branch
      %20 = sbr.rel (0) target = $region21
    $region20: #{tpu_custom_call.1} parent=1 // pred_region
      _
    $region21: #{tpu_custom_call.1} parent=1 // pred_fallthru
      _
    %v22 = vld [vmem:[%s1] sm:$0x3]
    %v23 = vld [vmem:[%s3] sm:$0x3]
    %v24 = vld [vmem:[%s2] sm:$0xf]
    %v25 = vld [vmem:[%s4] sm:$0xf]
    %v26 = vld [vmem:[%s0] sm:$0x3]
    %v29 = vunpack.c.l.s4 1983009808
    %v30 = vunpack.c.0.s8 %v29
    %v31 = vlaneseq
    %v32 = vshrl.u32 %v31, 7
    %v33 = vsub.s32 %v30, %v32
    %v34 = vrot.slane %v26, %v33
    %35 = vrot.lane.b32.xlu0 %v34, 3
    %v36 = vpop.permute.xlu0 %35
    %vm37 = vcmask 23552
    %v40 = vsel %vm37, 0, %v36
    %vm41 = vcmask 154624
    %v42 = vsel %vm41, %v40, 0
    %v44 = vrot.slane %v42, 6
    %45 = vrot.lane.b32.xlu0 %v44, 127
    %v46 = vpop.permute.xlu0 %45
    %v47 = vrot.slane %v42, 4
    %48 = vrot.lane.b32.xlu0 %v47, 126
    %v49 = vpop.permute.xlu0 %48
    %v50 = vrot.slane %v42, 2
    %51 = vrot.lane.b32.xlu0 %v50, 125
    %v52 = vpop.permute.xlu0 %51
    %53 = vrot.lane.b32.xlu0 %v42, 124
    %v54 = vpop.permute.xlu0 %53
    %55 = vrot.lane.b32.xlu0 %v44, 123
    %v56 = vpop.permute.xlu0 %55
    %57 = vrot.lane.b32.xlu0 %v47, 122
    %v58 = vpop.permute.xlu0 %57
    %vm59 = vcmask 1041408
    %v61 = vsel %vm59, %v42, %v46
    %vm62 = vcmask 1043456
    %v64 = vsel %vm62, %v61, %v49
    %vm65 = vcmask 1045504
    %v67 = vsel %vm65, %v64, %v52
    %v71 = vsel %vm59, %v54, %v56
    %v73 = vsel %vm62, %v71, %v58
    %75 = vset.pattern.permute.xlu0 0
    %76 = vperm.xlu0 %75, %v24
    %v77 = vpop.permute.xlu0 %76
    %vm79 = vcmask 228352
    %v81 = vsel %vm79, %v22, 0
    %v83 = vsel %vm65, %v73, 0
    %85 = vmatprep.subr.bf16.mxu0 0
    %86 = vmatpush1.bf16.msra.mxu0 %v67
    %87 = vmatprep.subr.bf16.mxu0 0
    %88 = vmatpush1.bf16.msra.mxu0 %v83
    %89 = vmatprep.subr.bf16.mxu0 0
    %90 = vmatpush1.bf16.msra.mxu0 0
    %91 = vmatprep.subr.bf16.mxu0 0
    %92 = vmatpush1.bf16.msra.mxu0 0
    %93 = vmatprep.subr.bf16.mxu0 0
    %94 = vmatpush1.bf16.msra.mxu0 0
    %95 = vmatprep.subr.bf16.mxu0 0
    %96 = vmatpush1.bf16.msra.mxu0 0
    %97 = vmatprep.subr.bf16.mxu0 0
    %98 = vmatpush1.bf16.msra.mxu0 0
    %99 = vmatprep.subr.bf16.mxu0 0
    %100 = vmatpush1.bf16.msra.mxu0 0
    %101 = vmatprep.subr.bf16.mxu0 0
    %102 = vmatpush1.bf16.msra.mxu0 0
    %103 = vmatprep.subr.bf16.mxu0 0
    %104 = vmatpush1.bf16.msra.mxu0 0
    %105 = vmatprep.subr.bf16.mxu0 0
    %106 = vmatpush1.bf16.msra.mxu0 0
    %107 = vmatprep.subr.bf16.mxu0 0
    %108 = vmatpush1.bf16.msra.mxu0 0
    %109 = vmatprep.subr.bf16.mxu0 0
    %110 = vmatpush1.bf16.msra.mxu0 0
    %111 = vmatprep.subr.bf16.mxu0 0
    %112 = vmatpush1.bf16.msra.mxu0 0
    %113 = vmatprep.subr.bf16.mxu0 0
    %114 = vmatpush1.bf16.msra.mxu0 0
    %115 = vmatprep.subr.bf16.mxu0 0
    %116 = vmatpush1.bf16.msra.mxu0 0
    %117 = vmatprep.mubr.bf16.mxu0 0
    %118 = vmatmul.mubr.bf16.gmra.mrb[0].mxu0 %v81
    %v119 = vpop.f32.mrb[0].mxu0
    %v120 = vadd.f32 %v77, %v119
    %v121 = vpop.f32.mrb[0].mxu0
    %v122 = vpop.f32.mrb[0].mxu0
    %v123 = vpop.f32.mrb[0].mxu0
    %124 = vdwg.mxu0
    %v125 = vmax.f32 %v120, 0.0
    %v126 = vpack.c.bf16 %v125, %v125
    %128 = vrot.lane.b32.xlu0 %v126, 3
    %v129 = vpop.permute.xlu0 %128
    %v131 = vsel %vm37, 0, %v129
    %v132 = vsel %vm41, %v131, 0
    %v134 = vrot.slane %v132, 6
    %135 = vrot.lane.b32.xlu0 %v134, 127
    %v136 = vpop.permute.xlu0 %135
    %v137 = vrot.slane %v132, 4
    %138 = vrot.lane.b32.xlu0 %v137, 126
    %v139 = vpop.permute.xlu0 %138
    %v140 = vrot.slane %v132, 2
    %141 = vrot.lane.b32.xlu0 %v140, 125
    %v142 = vpop.permute.xlu0 %141
    %143 = vrot.lane.b32.xlu0 %v132, 124
    %v144 = vpop.permute.xlu0 %143
    %145 = vrot.lane.b32.xlu0 %v134, 123
    %v146 = vpop.permute.xlu0 %145
    %147 = vrot.lane.b32.xlu0 %v137, 122
    %v148 = vpop.permute.xlu0 %147
    %v150 = vsel %vm59, %v132, %v136
    %v152 = vsel %vm62, %v150, %v139
    %v154 = vsel %vm65, %v152, %v142
    %v158 = vsel %vm59, %v144, %v146
    %v160 = vsel %vm62, %v158, %v148
    %162 = vset.pattern.permute.xlu0 0
    %163 = vperm.xlu0 %162, %v25
    %v164 = vpop.permute.xlu0 %163
    %v167 = vsel %vm79, %v23, 0
    %v169 = vsel %vm65, %v160, 0
    %171 = vmatprep.subr.bf16.mxu0 0
    %172 = vmatpush1.bf16.msra.mxu0 %v154
    %173 = vmatprep.subr.bf16.mxu0 0
    %174 = vmatpush1.bf16.msra.mxu0 %v169
    %175 = vmatprep.subr.bf16.mxu0 0
    %176 = vmatpush1.bf16.msra.mxu0 0
    %177 = vmatprep.subr.bf16.mxu0 0
    %178 = vmatpush1.bf16.msra.mxu0 0
    %179 = vmatprep.subr.bf16.mxu0 0
    %180 = vmatpush1.bf16.msra.mxu0 0
    %181 = vmatprep.subr.bf16.mxu0 0
    %182 = vmatpush1.bf16.msra.mxu0 0
    %183 = vmatprep.subr.bf16.mxu0 0
    %184 = vmatpush1.bf16.msra.mxu0 0
    %185 = vmatprep.subr.bf16.mxu0 0
    %186 = vmatpush1.bf16.msra.mxu0 0
    %187 = vmatprep.subr.bf16.mxu0 0
    %188 = vmatpush1.bf16.msra.mxu0 0
    %189 = vmatprep.subr.bf16.mxu0 0
    %190 = vmatpush1.bf16.msra.mxu0 0
    %191 = vmatprep.subr.bf16.mxu0 0
    %192 = vmatpush1.bf16.msra.mxu0 0
    %193 = vmatprep.subr.bf16.mxu0 0
    %194 = vmatpush1.bf16.msra.mxu0 0
    %195 = vmatprep.subr.bf16.mxu0 0
    %196 = vmatpush1.bf16.msra.mxu0 0
    %197 = vmatprep.subr.bf16.mxu0 0
    %198 = vmatpush1.bf16.msra.mxu0 0
    %199 = vmatprep.subr.bf16.mxu0 0
    %200 = vmatpush1.bf16.msra.mxu0 0
    %201 = vmatprep.subr.bf16.mxu0 0
    %202 = vmatpush1.bf16.msra.mxu0 0
    %203 = vmatprep.mubr.bf16.mxu0 0
    %204 = vmatmul.mubr.bf16.gmra.mrb[0].mxu0 %v167
    %v205 = vpop.f32.mrb[0].mxu0
    %v206 = vadd.f32 %v164, %v205
    %v207 = vpop.f32.mrb[0].mxu0
    %v208 = vpop.f32.mrb[0].mxu0
    %v209 = vpop.f32.mrb[0].mxu0
    %210 = vdwg.mxu0
    %v211 = vunpack.c.l.bf16 %v26
    %v212 = vadd.f32 %v206, %v211
    %v213 = vmax.f32 %v212, 0.0
    %vm214 = vcmask 125952
    %215 = vst.msk [vmem:[#allocation2] sm:$0xf] %vm214, %v213
    %s216 = scalar_lea.vmem %s0, 2
    %v217 = vld [vmem:[%s216] sm:$0x3]
    %v220 = vunpack.c.l.s4 1983009808
    %v221 = vunpack.c.0.s8 %v220
    %v222 = vlaneseq
    %v223 = vshrl.u32 %v222, 7
    %v224 = vsub.s32 %v221, %v223
    %v225 = vrot.slane %v217, %v224
    %226 = vrot.lane.b32.xlu0 %v225, 3
    %v227 = vpop.permute.xlu0 %226
    %v229 = vsel %vm37, 0, %v227
    %v230 = vsel %vm41, %v229, 0
    %v232 = vrot.slane %v230, 6
    %233 = vrot.lane.b32.xlu0 %v232, 127
    %v234 = vpop.permute.xlu0 %233
    %v235 = vrot.slane %v230, 4
    %236 = vrot.lane.b32.xlu0 %v235, 126
    %v237 = vpop.permute.xlu0 %236
    %v238 = vrot.slane %v230, 2
    %239 = vrot.lane.b32.xlu0 %v238, 125
    %v240 = vpop.permute.xlu0 %239
    %241 = vrot.lane.b32.xlu0 %v230, 124
    %v242 = vpop.permute.xlu0 %241
    %243 = vrot.lane.b32.xlu0 %v232, 123
    %v244 = vpop.permute.xlu0 %243
    %245 = vrot.lane.b32.xlu0 %v235, 122
    %v246 = vpop.permute.xlu0 %245
    %v248 = vsel %vm59, %v230, %v234
    %v250 = vsel %vm62, %v248, %v237
    %v252 = vsel %vm65, %v250, %v240
    %v256 = vsel %vm59, %v242, %v244
    %v258 = vsel %vm62, %v256, %v246
    %v259 = vsel %vm65, %v258, 0
    %261 = vmatprep.subr.bf16.mxu0 0
    %262 = vmatpush1.bf16.msra.mxu0 %v252
    %263 = vmatprep.subr.bf16.mxu0 0
    %264 = vmatpush1.bf16.msra.mxu0 %v259
    %265 = vmatprep.subr.bf16.mxu0 0
    %266 = vmatpush1.bf16.msra.mxu0 0
    %267 = vmatprep.subr.bf16.mxu0 0
    %268 = vmatpush1.bf16.msra.mxu0 0
    %269 = vmatprep.subr.bf16.mxu0 0
    %270 = vmatpush1.bf16.msra.mxu0 0
    %271 = vmatprep.subr.bf16.mxu0 0
    %272 = vmatpush1.bf16.msra.mxu0 0
    %273 = vmatprep.subr.bf16.mxu0 0
    %274 = vmatpush1.bf16.msra.mxu0 0
    %275 = vmatprep.subr.bf16.mxu0 0
    %276 = vmatpush1.bf16.msra.mxu0 0
    %277 = vmatprep.subr.bf16.mxu0 0
    %278 = vmatpush1.bf16.msra.mxu0 0
    %279 = vmatprep.subr.bf16.mxu0 0
    %280 = vmatpush1.bf16.msra.mxu0 0
    %281 = vmatprep.subr.bf16.mxu0 0
    %282 = vmatpush1.bf16.msra.mxu0 0
    %283 = vmatprep.subr.bf16.mxu0 0
    %284 = vmatpush1.bf16.msra.mxu0 0
    %285 = vmatprep.subr.bf16.mxu0 0
    %286 = vmatpush1.bf16.msra.mxu0 0
    %287 = vmatprep.subr.bf16.mxu0 0
    %288 = vmatpush1.bf16.msra.mxu0 0
    %289 = vmatprep.subr.bf16.mxu0 0
    %290 = vmatpush1.bf16.msra.mxu0 0
    %291 = vmatprep.subr.bf16.mxu0 0
    %292 = vmatpush1.bf16.msra.mxu0 0
    %293 = vmatprep.mubr.bf16.mxu0 0
    %294 = vmatmul.mubr.bf16.gmra.mrb[0].mxu0 %v81
    %v295 = vpop.f32.mrb[0].mxu0
    %v296 = vadd.f32 %v77, %v295
    %v297 = vpop.f32.mrb[0].mxu0
    %v298 = vpop.f32.mrb[0].mxu0
    %v299 = vpop.f32.mrb[0].mxu0
    %300 = vdwg.mxu0
    %v301 = vmax.f32 %v296, 0.0
    %v302 = vpack.c.bf16 %v301, %v301
    %304 = vrot.lane.b32.xlu0 %v302, 3
    %v305 = vpop.permute.xlu0 %304
    %v307 = vsel %vm37, 0, %v305
    %v308 = vsel %vm41, %v307, 0
    %v310 = vrot.slane %v308, 6
    %311 = vrot.lane.b32.xlu0 %v310, 127
    %v312 = vpop.permute.xlu0 %311
    %v313 = vrot.slane %v308, 4
    %314 = vrot.lane.b32.xlu0 %v313, 126
    %v315 = vpop.permute.xlu0 %314
    %v316 = vrot.slane %v308, 2
    %317 = vrot.lane.b32.xlu0 %v316, 125
    %v318 = vpop.permute.xlu0 %317
    %319 = vrot.lane.b32.xlu0 %v308, 124
    %v320 = vpop.permute.xlu0 %319
    %321 = vrot.lane.b32.xlu0 %v310, 123
    %v322 = vpop.permute.xlu0 %321
    %323 = vrot.lane.b32.xlu0 %v313, 122
    %v324 = vpop.permute.xlu0 %323
    %v326 = vsel %vm59, %v308, %v312
    %v328 = vsel %vm62, %v326, %v315
    %v330 = vsel %vm65, %v328, %v318
    %v334 = vsel %vm59, %v320, %v322
    %v336 = vsel %vm62, %v334, %v324
    %v337 = vsel %vm65, %v336, 0
    %339 = vmatprep.subr.bf16.mxu0 0
    %340 = vmatpush1.bf16.msra.mxu0 %v330
    %341 = vmatprep.subr.bf16.mxu0 0
    %342 = vmatpush1.bf16.msra.mxu0 %v337
    %343 = vmatprep.subr.bf16.mxu0 0
    %344 = vmatpush1.bf16.msra.mxu0 0
    %345 = vmatprep.subr.bf16.mxu0 0
    %346 = vmatpush1.bf16.msra.mxu0 0
    %347 = vmatprep.subr.bf16.mxu0 0
    %348 = vmatpush1.bf16.msra.mxu0 0
    %349 = vmatprep.subr.bf16.mxu0 0
    %350 = vmatpush1.bf16.msra.mxu0 0
    %351 = vmatprep.subr.bf16.mxu0 0
    %352 = vmatpush1.bf16.msra.mxu0 0
    %353 = vmatprep.subr.bf16.mxu0 0
    %354 = vmatpush1.bf16.msra.mxu0 0
    %355 = vmatprep.subr.bf16.mxu0 0
    %356 = vmatpush1.bf16.msra.mxu0 0
    %357 = vmatprep.subr.bf16.mxu0 0
    %358 = vmatpush1.bf16.msra.mxu0 0
    %359 = vmatprep.subr.bf16.mxu0 0
    %360 = vmatpush1.bf16.msra.mxu0 0
    %361 = vmatprep.subr.bf16.mxu0 0
    %362 = vmatpush1.bf16.msra.mxu0 0
    %363 = vmatprep.subr.bf16.mxu0 0
    %364 = vmatpush1.bf16.msra.mxu0 0
    %365 = vmatprep.subr.bf16.mxu0 0
    %366 = vmatpush1.bf16.msra.mxu0 0
    %367 = vmatprep.subr.bf16.mxu0 0
    %368 = vmatpush1.bf16.msra.mxu0 0
    %369 = vmatprep.subr.bf16.mxu0 0
    %370 = vmatpush1.bf16.msra.mxu0 0
    %371 = vmatprep.mubr.bf16.mxu0 0
    %372 = vmatmul.mubr.bf16.gmra.mrb[0].mxu0 %v167
    %v373 = vpop.f32.mrb[0].mxu0
    %v374 = vadd.f32 %v164, %v373
    %v375 = vpop.f32.mrb[0].mxu0
    %v376 = vpop.f32.mrb[0].mxu0
    %v377 = vpop.f32.mrb[0].mxu0
    %378 = vdwg.mxu0
    %v379 = vunpack.c.l.bf16 %v217
    %v380 = vadd.f32 %v374, %v379
    %v381 = vmax.f32 %v380, 0.0
    %s382 = scalar_lea.vmem [#allocation2], 4
    %383 = vst.msk [vmem:[%s382] sm:$0xf] %vm214, %v381
    // Predicated region
    $region22: #{tpu_custom_call.1} parent=1 // pred_check
      _
    $region23: #{tpu_custom_call.1} parent=1 // pred_check_branch
      %385 = sbr.rel (0) target = $region25
    $region24: #{tpu_custom_call.1} parent=1 // pred_region
      %s387 = ssub.s32 128, 128
      %388 = vsyncadd [#allocation3], %s387
      %s389 = sshll.u32 [#allocation2], 4
      %s390 = int_to_ptr.vmem [resolvable:$true] %s389
      %395 = dma.vmem_to_hbm [thread:$0]  %s390, 128, %s5, [#allocation3], 64, 64, 4
    $region25: #{tpu_custom_call.1} parent=1 // pred_fallthru
      _
    // Predicated region
    $region26: #{tpu_custom_call.1} parent=1 // pred_check
      _
    $region27: #{tpu_custom_call.1} parent=1 // pred_check_branch
      %397 = sbr.rel (0) target = $region29
    $region28: #{tpu_custom_call.1} parent=1 // pred_region
      %398 = dma.done [#allocation3], 128
    $region29: #{tpu_custom_call.1} parent=1 // pred_fallthru
      _
    %399 = vsyncpa [#allocation3], 1

</llo_original>
